<compile_context>
chip_gen: v7x
topology: tpu7x:2x2x1
jax: 0.10.0
libtpu: 0.0.40
codegen_flags: <defaults>
</compile_context>

<pallas_src>
import functools
import math

import jax
import jax.numpy as jnp
from jax.experimental import pallas as pl
from jax.experimental.pallas import tpu as pltpu


def _round_up(x, m):
    return ((x + m - 1) // m) * m


def _generator_kernel(az_ref, w1_ref, b1_ref, w2_ref, b2_ref, o_ref):
    """One batch tile of: relu(fc2(leaky_relu(fc1([a | z]), 0.2)))."""
    # fc1: single fused dot over K = a_dim + z_dim, f32 accumulation on the MXU.
    h = jnp.dot(az_ref[...], w1_ref[...], preferred_element_type=jnp.float32)
    h = h + b1_ref[...]
    # leaky_relu(negative_slope=0.2): identical numerics to where() for slope in (0,1).
    h = jnp.maximum(h, 0.2 * h)
    # Only downcast the f32 accumulator if fc2 weights are low precision.
    h_in = h if w2_ref.dtype == jnp.float32 else h.astype(w2_ref.dtype)
    x = jnp.dot(h_in, w2_ref[...], preferred_element_type=jnp.float32)
    x = x + b2_ref[...]
    o_ref[...] = jnp.maximum(x, 0.0).astype(o_ref.dtype)


def prepare_generator_params(w1, b1, w2, b2):
    """One-time (per model, not per call) parameter prep.

    w1 : [a_dim+z_dim, H]  fc1 weight (transposed vs torch layout)
    b1 : [H]               fc1 bias
    w2 : [H, x_dim]        fc2 weight (transposed vs torch layout)
    b2 : [x_dim]           fc2 bias

    Pads the output feature dim up to a multiple of 128 (lane-dense stores) and
    reshapes biases to 2-D rows, so none of this is redone per forward call.
    """
    in_dim, H = w1.shape
    x_dim = w2.shape[1]
    x_pad = _round_up(x_dim, 128)
    b1 = jnp.asarray(b1).reshape(1, H)
    b2 = jnp.asarray(b2).reshape(1, x_dim)
    if x_pad != x_dim:
        w2 = jnp.pad(w2, ((0, 0), (0, x_pad - x_dim)))
        b2 = jnp.pad(b2, ((0, 0), (0, x_pad - x_dim)))
    return {"w1": w1, "b1": b1, "w2": w2, "b2": b2, "x_dim": x_dim}


@functools.partial(jax.jit, static_argnames=("x_dim", "tile_b", "compute_dtype"))
def _generator_forward_jit(a, z, w1, b1, w2, b2, *, x_dim, tile_b=512,
                           compute_dtype=None):
    B = a.shape[0]
    in_dim, H = w1.shape
    x_pad = w2.shape[1]

    # Pre-pack [a | z] once (tiny array); the kernel then runs one K=in_dim dot.
    az = jnp.concatenate([a, z], axis=1)

    if compute_dtype is not None:  # optional bf16 MXU path
        az = az.astype(compute_dtype)
        w1 = w1.astype(compute_dtype)
        w2 = w2.astype(compute_dtype)

    # Batch tiling: cdiv grid (no padded activation copy). Cap tile_b so the
    # grid has >= 2 steps when possible (v7x megacore sharding of the batch).
    tile_b = max(8, min(tile_b, _round_up(pl.cdiv(B, 2), 8), _round_up(B, 8)))
    grid = (pl.cdiv(B, tile_b),)

    # Explicit VMEM budget: double-buffered activation/output tiles, resident
    # (double-buffered) weights, sublane-padded biases, f32 intermediates.
    act_item = jnp.dtype(az.dtype).itemsize
    w_item = jnp.dtype(w1.dtype).itemsize
    out_item = jnp.dtype(a.dtype).itemsize
    est = (2 * tile_b * in_dim * act_item          # az tiles
           + 2 * tile_b * x_pad * out_item         # out tiles
           + 2 * (in_dim * H + H * x_pad) * w_item # weights
           + 2 * 8 * (H + x_pad) * 4               # biases (sublane padded)
           + 3 * tile_b * max(H, x_pad) * 4)       # f32 intermediates/headroom
    vmem_limit = int(min(64 * 1024 * 1024, max(32 * 1024 * 1024, 2 * est)))

    out = pl.pallas_call(
        _generator_kernel,
        out_shape=jax.ShapeDtypeStruct((B, x_pad), a.dtype),
        grid=grid,
        in_specs=[
            # batch-tiled packed activations
            pl.BlockSpec((tile_b, in_dim), lambda i: (i, 0)),
            # weights / biases: full arrays, resident across the grid
            pl.BlockSpec((in_dim, H), lambda i: (0, 0)),
            pl.BlockSpec((1, H), lambda i: (0, 0)),
            pl.BlockSpec((H, x_pad), lambda i: (0, 0)),
            pl.BlockSpec((1, x_pad), lambda i: (0, 0)),
        ],
        out_specs=pl.BlockSpec((tile_b, x_pad), lambda i: (i, 0)),
        compiler_params=pltpu.CompilerParams(
            dimension_semantics=("parallel",),
            vmem_limit_bytes=vmem_limit),
    )(az, w1, b1, w2, b2)

    # Strip the lane-padding (fuses under jit).
    return out[:, :x_dim] if x_pad != x_dim else out


def generator_forward(a, z, params, *, tile_b=512, compute_dtype=None, key=None):
    """Pallas Generator.forward.  a: [B, a_dim]; z: [B, z_dim] or None."""
    if z is None:
        # torch: z = torch.randn(a.size(0), z_dim) — fresh noise per call, so an
        # explicit PRNG key is required (no silent fixed seed).
        if key is None:
            raise ValueError("z=None requires an explicit PRNG key for fresh noise")
        z_dim = params["w1"].shape[0] - a.shape[1]
        z = jax.random.normal(key, (a.shape[0], z_dim), a.dtype)
    return _generator_forward_jit(
        a, z, params["w1"], params["b1"], params["w2"], params["b2"],
        x_dim=params["x_dim"], tile_b=tile_b, compute_dtype=compute_dtype)


def _xavier_uniform(key, shape, dtype=jnp.float32):
    """Xavier/Glorot uniform init (matches nn.init.xavier_uniform_)."""
    fan_in, fan_out = shape
    limit = math.sqrt(6.0 / (fan_in + fan_out))
    return jax.random.uniform(key, shape, dtype, minval=-limit, maxval=limit)


def _reference_forward(a, z, w1, b1, w2, b2):
    az = jnp.concatenate([a, z], axis=1)
    h = az @ w1 + b1.reshape(1, -1)
    h = jnp.where(h >= 0.0, h, 0.2 * h)
    x = h @ w2 + b2.reshape(1, -1)
    return jnp.maximum(x, 0.0)


if __name__ == "__main__":
    # Small shapes consistent with the module's forward:
    #   a_dim=16, z_dim=16, hidden_dim=128, x_dim=64.
    # B=70 deliberately non-multiple-of-8 / non-multiple-of-tile to exercise the
    # partial-boundary-block path and the 2-step grid.
    B, A_DIM, Z_DIM, HIDDEN, X_DIM = 70, 16, 16, 128, 64

    key = jax.random.PRNGKey(0)
    k_a, k_z, k_w1, k_b1, k_w2, k_b2 = jax.random.split(key, 6)

    a = jax.random.normal(k_a, (B, A_DIM), jnp.float32)
    z = jax.random.normal(k_z, (B, Z_DIM), jnp.float32)  # torch.randn(a.size(0), z_dim)

    w1 = _xavier_uniform(k_w1, (A_DIM + Z_DIM, HIDDEN))
    b1 = 0.05 * jax.random.normal(k_b1, (HIDDEN,), jnp.float32)
    w2 = _xavier_uniform(k_w2, (HIDDEN, X_DIM))
    b2 = 0.05 * jax.random.normal(k_b2, (X_DIM,), jnp.float32)

    # One-time weight prep (not per call).
    params = prepare_generator_params(w1, b1, w2, b2)

    out = generator_forward(a, z, params)
    out = jax.block_until_ready(out)

    ref = _reference_forward(a, z, w1, b1, w2, b2)
    assert out.shape == (B, X_DIM)
    assert jnp.allclose(out, ref, atol=1e-5, rtol=1e-5)

    print("KERNEL_OK")
</pallas_src>

<mosaic_0001>
module attributes {stable_mosaic.version = 11 : i64} {
  func.func @_generator_kernel(%arg0: i32, %arg1: memref<40x32xf32, #tpu.memory_space<vmem>>, %arg2: memref<32x128xf32, #tpu.memory_space<vmem>>, %arg3: memref<1x128xf32, #tpu.memory_space<vmem>>, %arg4: memref<128x128xf32, #tpu.memory_space<vmem>>, %arg5: memref<1x128xf32, #tpu.memory_space<vmem>>, %arg6: memref<40x128xf32, #tpu.memory_space<vmem>>) attributes {dimension_semantics = [#tpu.dimension_semantics<parallel>], iteration_bounds = array<i64: 2>, scalar_prefetch = 0 : i64, scratch_operands = 0 : i64, tpu.core_type = #tpu.core_type<tc>, window_params = [{transform_indices = @transform_0, window_bounds = array<i64: 40, 32>}, {pipeline_mode = #tpu.pipeline_mode<synchronous>, transform_indices = @transform_1, window_bounds = array<i64: 32, 128>}, {pipeline_mode = #tpu.pipeline_mode<synchronous>, transform_indices = @transform_2, window_bounds = array<i64: 1, 128>}, {pipeline_mode = #tpu.pipeline_mode<synchronous>, transform_indices = @transform_3, window_bounds = array<i64: 128, 128>}, {pipeline_mode = #tpu.pipeline_mode<synchronous>, transform_indices = @transform_4, window_bounds = array<i64: 1, 128>}, {transform_indices = @transform_5, window_bounds = array<i64: 40, 128>}]} {
    %c0 = arith.constant 0 : index
    %c0_0 = arith.constant 0 : index
    %0 = vector.load %arg1[%c0, %c0_0] : memref<40x32xf32, #tpu.memory_space<vmem>>, vector<40x32xf32>
    %c0_1 = arith.constant 0 : index
    %c0_2 = arith.constant 0 : index
    %1 = vector.load %arg2[%c0_1, %c0_2] : memref<32x128xf32, #tpu.memory_space<vmem>>, vector<32x128xf32>
    %cst = arith.constant dense<0.000000e+00> : vector<40x128xf32>
    %2 = tpu.matmul %0, %1, %cst {dimension_numbers = #tpu.dot_dimension_numbers<[1], [0], [0], [1], [0, 0, 1, 1], [], []>} : vector<40x32xf32>, vector<32x128xf32>, vector<40x128xf32> -> vector<40x128xf32>
    %c0_3 = arith.constant 0 : index
    %c0_4 = arith.constant 0 : index
    %3 = vector.load %arg3[%c0_3, %c0_4] : memref<1x128xf32, #tpu.memory_space<vmem>>, vector<1x128xf32>
    %4 = vector.broadcast %3 : vector<1x128xf32> to vector<40x128xf32>
    %5 = arith.addf %2, %4 : vector<40x128xf32>
    %cst_5 = arith.constant 2.000000e-01 : f32
    %6 = vector.broadcast %cst_5 : f32 to vector<40x128xf32>
    %7 = arith.mulf %6, %5 : vector<40x128xf32>
    %8 = arith.maximumf %5, %7 : vector<40x128xf32>
    %c0_6 = arith.constant 0 : index
    %c0_7 = arith.constant 0 : index
    %9 = vector.load %arg4[%c0_6, %c0_7] : memref<128x128xf32, #tpu.memory_space<vmem>>, vector<128x128xf32>
    %cst_8 = arith.constant dense<0.000000e+00> : vector<40x128xf32>
    %10 = tpu.matmul %8, %9, %cst_8 {dimension_numbers = #tpu.dot_dimension_numbers<[1], [0], [0], [1], [0, 0, 1, 1], [], []>} : vector<40x128xf32>, vector<128x128xf32>, vector<40x128xf32> -> vector<40x128xf32>
    %c0_9 = arith.constant 0 : index
    %c0_10 = arith.constant 0 : index
    %11 = vector.load %arg5[%c0_9, %c0_10] : memref<1x128xf32, #tpu.memory_space<vmem>>, vector<1x128xf32>
    %12 = vector.broadcast %11 : vector<1x128xf32> to vector<40x128xf32>
    %13 = arith.addf %10, %12 : vector<40x128xf32>
    %cst_11 = arith.constant 0.000000e+00 : f32
    %14 = vector.broadcast %cst_11 : f32 to vector<40x128xf32>
    %15 = arith.maximumf %13, %14 : vector<40x128xf32>
    %c0_12 = arith.constant 0 : index
    %c0_13 = arith.constant 0 : index
    %16 = vector.load %arg6[%c0_12, %c0_13] : memref<40x128xf32, #tpu.memory_space<vmem>>, vector<40x128xf32>
    tpu.vector_store %arg6[%c0_12, %c0_13], %15 {strides = array<i32>} : memref<40x128xf32, #tpu.memory_space<vmem>>, vector<40x128xf32>,
    return
  }
  func.func @transform_0(%arg0: i32) -> (i32, i32) {
    %c0_i32 = arith.constant 0 : i32
    %c0_i32_0 = arith.constant 0 : i32
    return %arg0, %c0_i32 : i32, i32
  }
  func.func @transform_1(%arg0: i32) -> (i32, i32) {
    %c0_i32 = arith.constant 0 : i32
    %c0_i32_0 = arith.constant 0 : i32
    %c0_i32_1 = arith.constant 0 : i32
    return %c0_i32, %c0_i32_0 : i32, i32
  }
  func.func @transform_2(%arg0: i32) -> (i32, i32) {
    %c0_i32 = arith.constant 0 : i32
    %c0_i32_0 = arith.constant 0 : i32
    %c0_i32_1 = arith.constant 0 : i32
    return %c0_i32, %c0_i32_0 : i32, i32
  }
  func.func @transform_3(%arg0: i32) -> (i32, i32) {
    %c0_i32 = arith.constant 0 : i32
    %c0_i32_0 = arith.constant 0 : i32
    %c0_i32_1 = arith.constant 0 : i32
    return %c0_i32, %c0_i32_0 : i32, i32
  }
  func.func @transform_4(%arg0: i32) -> (i32, i32) {
    %c0_i32 = arith.constant 0 : i32
    %c0_i32_0 = arith.constant 0 : i32
    %c0_i32_1 = arith.constant 0 : i32
    return %c0_i32, %c0_i32_0 : i32, i32
  }
  func.func @transform_5(%arg0: i32) -> (i32, i32) {
    %c0_i32 = arith.constant 0 : i32
    %c0_i32_0 = arith.constant 0 : i32
    return %arg0, %c0_i32 : i32, i32
  }
}

</mosaic_0001>

<llo_original>
// kernel: _generator_forward_jit.1
$region0: #{_generator_forward_jit.1}
  #allocation0 [shape = 'u32[]', space=smem, size = 0x4, offset = 0x4, fixed_abs, tag = 'smem constant byte address 0x4 - core index']
  #allocation1 [shape = 'u32[144,128]{1,0:T(1,128)}', space=vmem, size = 0x12000, scoped, tag = 'internal scratch']
  %s0 = inlined_call_operand.vmem [shape: f32[70,32], index: 0, kind: input, shape index: {}]
  %s1 = inlined_call_operand.vmem [shape: f32[32,128], index: 1, kind: input, shape index: {}]
  %s2 = inlined_call_operand.vmem [shape: f32[1,128], index: 2, kind: input, shape index: {}]
  %s3 = inlined_call_operand.vmem [shape: f32[128,128], index: 3, kind: input, shape index: {}]
  %s4 = inlined_call_operand.vmem [shape: f32[1,128], index: 4, kind: input, shape index: {}]
  %s5 = inlined_call_operand.vmem [shape: f32[70,128], index: 5, kind: output, shape index: {}]
  %s6 = sld [smem:[#allocation0]]
  $region101: #{_generator_forward_jit.1} parent=0
    _
  %s8 = ssub.s32 1, %s6
  %s9 = scalar_select 0, %s8, %s6
  $region1: #{_generator_forward_jit.1} parent=0
    #allocation2 [shape = 'u8[40960]{0}', space=vmem, size = 0xa000, scoped, tag = 'output window, operand 0']
    loop: start=0, step=1, limit=4
    $region2: #{_generator_forward_jit.1} parent=1 // loop_pre_header
      _
    $region3: #{_generator_forward_jit.1} parent=1 // loop_header
      %s11 = sphi 0, %s15
      %p12 = scmp.ge.s32.totalorder %s11, 4
      %s21 = sphi 0, %s23
      %s24 = sphi 0, %s21
      %s25 = sphi 0, %s24
      %s41 = sphi 0, %s25
      %s45 = sphi 0, %s45
      %s47 = sphi 0, %s45
      %s48 = sphi 0, %s47
      %s62 = sphi 0, %s48
      %s66 = sphi 0, %s66
      %s68 = sphi 0, %s66
      %s69 = sphi 0, %s68
      %s83 = sphi 0, %s69
      %s87 = sphi 0, %s87
      %s89 = sphi 0, %s87
      %s90 = sphi 0, %s89
      %s104 = sphi 0, %s90
      %s108 = sphi 0, %s108
      %s110 = sphi 0, %s108
      %s111 = sphi 0, %s110
      %s125 = sphi 0, %s111
      %s131 = sphi 0, %s133
      %s134 = sphi 0, %s131
      %s135 = sphi 0, %s134
      %s151 = sphi 0, %s135
    $region4: #{_generator_forward_jit.1} parent=1 // loop_header_branch
      %14 = sbr.rel (%p12) target = $region8
    $region5: #{_generator_forward_jit.1} parent=1 // loop_body
      %s16 = ssub.s32 %s11, 1
      %s17 = ssub.s32 %s11, 2
      %s18 = sadd.s32 %s11, 1
      %s19 = ssub.s32 %s11, %s18
      %p20 = scmp.eq.s32.totalorder %s19, 0
      %s22 = sadd.s32 %s21, 1
      %s23 = scalar_select %p20, %s21, %s22
      %p26 = pneg %p20
      %p27 = scmp.eq.s32.totalorder %s11, 1
      %p28 = por %p26, %p27
      %p29 = scmp.ne.s32.totalorder %s21, %s24
      %p30 = scmp.eq.s32.totalorder %s11, 0
      %p31 = por %p29, %p30
      %p32 = scmp.ne.s32.totalorder %s21, %s24
      %p33 = scmp.eq.s32.totalorder %s16, 1
      %p34 = por %p32, %p33
      %p35 = scmp.ne.s32.totalorder %s24, %s25
      %p36 = scmp.eq.s32.totalorder %s16, 0
      %p37 = por %p35, %p36
      %p38 = scmp.ne.s32.totalorder %s24, %s25
      %p39 = scmp.eq.s32.totalorder %s17, 1
      %p40 = por %p38, %p39
      %p42 = scmp.ne.s32.totalorder %s25, %s41
      %p43 = scmp.eq.s32.totalorder %s17, 0
      %p44 = por %p42, %p43
      %s46 = sadd.s32 %s45, 1
      %p49 = scmp.eq.s32.totalorder %s11, 1
      %p50 = scmp.ne.s32.totalorder %s45, %s47
      %p51 = scmp.eq.s32.totalorder %s11, 0
      %p52 = por %p50, %p51
      %p53 = scmp.ne.s32.totalorder %s45, %s47
      %p54 = scmp.eq.s32.totalorder %s16, 1
      %p55 = por %p53, %p54
      %p56 = scmp.ne.s32.totalorder %s47, %s48
      %p57 = scmp.eq.s32.totalorder %s16, 0
      %p58 = por %p56, %p57
      %p59 = scmp.ne.s32.totalorder %s47, %s48
      %p60 = scmp.eq.s32.totalorder %s17, 1
      %p61 = por %p59, %p60
      %p63 = scmp.ne.s32.totalorder %s48, %s62
      %p64 = scmp.eq.s32.totalorder %s17, 0
      %p65 = por %p63, %p64
      %s67 = sadd.s32 %s66, 1
      %p70 = scmp.eq.s32.totalorder %s11, 1
      %p71 = scmp.ne.s32.totalorder %s66, %s68
      %p72 = scmp.eq.s32.totalorder %s11, 0
      %p73 = por %p71, %p72
      %p74 = scmp.ne.s32.totalorder %s66, %s68
      %p75 = scmp.eq.s32.totalorder %s16, 1
      %p76 = por %p74, %p75
      %p77 = scmp.ne.s32.totalorder %s68, %s69
      %p78 = scmp.eq.s32.totalorder %s16, 0
      %p79 = por %p77, %p78
      %p80 = scmp.ne.s32.totalorder %s68, %s69
      %p81 = scmp.eq.s32.totalorder %s17, 1
      %p82 = por %p80, %p81
      %p84 = scmp.ne.s32.totalorder %s69, %s83
      %p85 = scmp.eq.s32.totalorder %s17, 0
      %p86 = por %p84, %p85
      %s88 = sadd.s32 %s87, 1
      %p91 = scmp.eq.s32.totalorder %s11, 1
      %p92 = scmp.ne.s32.totalorder %s87, %s89
      %p93 = scmp.eq.s32.totalorder %s11, 0
      %p94 = por %p92, %p93
      %p95 = scmp.ne.s32.totalorder %s87, %s89
      %p96 = scmp.eq.s32.totalorder %s16, 1
      %p97 = por %p95, %p96
      %p98 = scmp.ne.s32.totalorder %s89, %s90
      %p99 = scmp.eq.s32.totalorder %s16, 0
      %p100 = por %p98, %p99
      %p101 = scmp.ne.s32.totalorder %s89, %s90
      %p102 = scmp.eq.s32.totalorder %s17, 1
      %p103 = por %p101, %p102
      %p105 = scmp.ne.s32.totalorder %s90, %s104
      %p106 = scmp.eq.s32.totalorder %s17, 0
      %p107 = por %p105, %p106
      %s109 = sadd.s32 %s108, 1
      %p112 = scmp.eq.s32.totalorder %s11, 1
      %p113 = scmp.ne.s32.totalorder %s108, %s110
      %p114 = scmp.eq.s32.totalorder %s11, 0
      %p115 = por %p113, %p114
      %p116 = scmp.ne.s32.totalorder %s108, %s110
      %p117 = scmp.eq.s32.totalorder %s16, 1
      %p118 = por %p116, %p117
      %p119 = scmp.ne.s32.totalorder %s110, %s111
      %p120 = scmp.eq.s32.totalorder %s16, 0
      %p121 = por %p119, %p120
      %p122 = scmp.ne.s32.totalorder %s110, %s111
      %p123 = scmp.eq.s32.totalorder %s17, 1
      %p124 = por %p122, %p123
      %p126 = scmp.ne.s32.totalorder %s111, %s125
      %p127 = scmp.eq.s32.totalorder %s17, 0
      %p128 = por %p126, %p127
      %s129 = ssub.s32 %s11, %s18
      %p130 = scmp.eq.s32.totalorder %s129, 0
      %s132 = sadd.s32 %s131, 1
      %s133 = scalar_select %p130, %s131, %s132
      %p136 = pneg %p130
      %p137 = scmp.eq.s32.totalorder %s11, 1
      %p138 = por %p136, %p137
      %p139 = scmp.ne.s32.totalorder %s131, %s134
      %p140 = scmp.eq.s32.totalorder %s11, 0
      %p141 = por %p139, %p140
      %p142 = scmp.ne.s32.totalorder %s131, %s134
      %p143 = scmp.eq.s32.totalorder %s16, 1
      %p144 = por %p142, %p143
      %p145 = scmp.ne.s32.totalorder %s134, %s135
      %p146 = scmp.eq.s32.totalorder %s16, 0
      %p147 = por %p145, %p146
      %p148 = scmp.ne.s32.totalorder %s134, %s135
      %p149 = scmp.eq.s32.totalorder %s17, 1
      %p150 = por %p148, %p149
      %p152 = scmp.ne.s32.totalorder %s135, %s151
      %p153 = scmp.eq.s32.totalorder %s17, 0
      %p154 = por %p152, %p153
      %p155 = scmp.le.s32.totalorder 1, %s11
      %p156 = scmp.lt.s32.totalorder %s11, 3
      %p157 = pnand %p155, %p156
      %p158 = pneg %p157
      // Predicated region
      $region9: #{_generator_forward_jit.1} parent=5 // pred_check
        _
      $region10: #{_generator_forward_jit.1} parent=5 // pred_check_branch
        %160 = sbr.rel (%p157) target = $region12
      $region11: #{_generator_forward_jit.1} parent=5 // pred_region
        %s161 = ssub.s32 %s11, 1
        // Predicated region
        $region13: #{_generator_forward_jit.1} parent=11 // pred_check
          %p162 = pneg %p58
        $region14: #{_generator_forward_jit.1} parent=11 // pred_check_branch
          %164 = sbr.rel (%p162) target = $region16
        $region15: #{_generator_forward_jit.1} parent=11 // pred_region
          _
        $region16: #{_generator_forward_jit.1} parent=11 // pred_fallthru
          _
        // Predicated region
        $region17: #{_generator_forward_jit.1} parent=11 // pred_check
          %p165 = pneg %p79
        $region18: #{_generator_forward_jit.1} parent=11 // pred_check_branch
          %167 = sbr.rel (%p165) target = $region20
        $region19: #{_generator_forward_jit.1} parent=11 // pred_region
          _
        $region20: #{_generator_forward_jit.1} parent=11 // pred_fallthru
          _
        // Predicated region
        $region21: #{_generator_forward_jit.1} parent=11 // pred_check
          %p168 = pneg %p100
        $region22: #{_generator_forward_jit.1} parent=11 // pred_check_branch
          %170 = sbr.rel (%p168) target = $region24
        $region23: #{_generator_forward_jit.1} parent=11 // pred_region
          _
        $region24: #{_generator_forward_jit.1} parent=11 // pred_fallthru
          _
        // Predicated region
        $region25: #{_generator_forward_jit.1} parent=11 // pred_check
          %p171 = pneg %p121
        $region26: #{_generator_forward_jit.1} parent=11 // pred_check_branch
          %173 = sbr.rel (%p171) target = $region28
        $region27: #{_generator_forward_jit.1} parent=11 // pred_region
          _
        $region28: #{_generator_forward_jit.1} parent=11 // pred_fallthru
          _
      $region12: #{_generator_forward_jit.1} parent=5 // pred_fallthru
        _
      %p174 = scmp.lt.s32.totalorder %s11, 2
      // Predicated region
      $region29: #{_generator_forward_jit.1} parent=5 // pred_check
        %p175 = pneg %p174
      $region30: #{_generator_forward_jit.1} parent=5 // pred_check_branch
        %177 = sbr.rel (%p175) target = $region32
      $region31: #{_generator_forward_jit.1} parent=5 // pred_region
        // Predicated region
        $region33: #{_generator_forward_jit.1} parent=31 // pred_check
          %p178 = pneg %p31
        $region34: #{_generator_forward_jit.1} parent=31 // pred_check_branch
          %180 = sbr.rel (%p178) target = $region36
        $region35: #{_generator_forward_jit.1} parent=31 // pred_region
          %s181 = smul.u32 5, %s11
          %s182 = ssub.s32 9, %s181
          %p183 = scmp.lt.s32.totalorder %s182, 5
          %s184 = scalar_select %p183, %s182, 5
          %s185 = smul.u32 128, %s184
          %p186 = scmp.lt.s32.totalorder %s181, 8
          %s187 = scalar_select %p186, %s181, 8
          %s188 = smul.addr %s187, 8
          %s189 = scalar_lea.vmem %s0, %s188
          %s190 = smul.u32 5, %s11
          %s191 = ssub.s32 9, %s190
          %p192 = scmp.lt.s32.totalorder %s191, 5
          %s193 = scalar_select %p192, %s191, 5
          %s194 = smul.u32 128, %s193
        $region36: #{_generator_forward_jit.1} parent=31 // pred_fallthru
          _
      $region32: #{_generator_forward_jit.1} parent=5 // pred_fallthru
        _
      %p195 = scmp.le.s32.totalorder 1, %s11
      %p196 = scmp.lt.s32.totalorder %s11, 3
      %p197 = pnand %p195, %p196
      %p198 = pneg %p197
      // Predicated region
      $region37: #{_generator_forward_jit.1} parent=5 // pred_check
        _
      $region38: #{_generator_forward_jit.1} parent=5 // pred_check_branch
        %200 = sbr.rel (%p197) target = $region40
      $region39: #{_generator_forward_jit.1} parent=5 // pred_region
        %s201 = ssub.s32 %s11, 1
        %s202 = smul.u32 5, %s16
        %s203 = ssub.s32 9, %s202
        %p204 = scmp.lt.s32.totalorder %s203, 5
        %s205 = scalar_select %p204, %s203, 5
        %s206 = smul.u32 128, %s205
        %p207 = scmp.lt.s32.totalorder %s202, 8
        %s208 = scalar_select %p207, %s202, 8
        %s209 = smul.addr %s208, 8
        %s210 = scalar_lea.vmem %s0, %s209
        %p211 = pneg %p37
        %p212 = pneg %p34
        %p213 = pneg %p58
        %p214 = pneg %p55
        %p215 = pneg %p79
        %p216 = pneg %p76
        %p217 = pneg %p100
        %p218 = pneg %p97
        %p219 = pneg %p121
        %p220 = pneg %p118
        %p221 = pneg %p147
        %p222 = pneg %p144
        %s223 = sand.u32 %s134, 1
        %s224 = sand.u32 %s134, 1
        %s225 = smul.addr %s224, 40
        %s226 = scalar_lea.vmem [#allocation2], %s225
        %s227 = smul.u32 5, %s16
        %s228 = ssub.s32 9, %s227
        %p229 = scmp.lt.s32.totalorder %s228, 5
        %s230 = scalar_select %p229, %s228, 5
        %s231 = smul.u32 128, %s230
        %p232 = scmp.lt.s32.totalorder %s227, 8
        %s233 = scalar_select %p232, %s227, 8
        %s234 = smul.addr %s233, 8
        %s235 = scalar_lea.vmem %s0, %s234
        %s236 = smul.u32 5, %s16
        %s237 = ssub.s32 9, %s236
        %p238 = scmp.lt.s32.totalorder %s237, 5
        %s239 = scalar_select %p238, %s237, 5
        %s240 = smul.u32 128, %s239
        %s241 = smul.u32 5, %s16
        %s242 = ssub.s32 9, %s241
        %p243 = scmp.lt.s32.totalorder %s242, 5
        %s244 = scalar_select %p243, %s242, 5
        %s245 = smul.u32 128, %s244
        %v246 = vld [vmem:[%s235] sm:$0xff]
        %v247 = vld [vmem:[%s235 + $0x8] sm:$0xff]
        %v248 = vld [vmem:[%s235 + $0x10] sm:$0xff]
        %v249 = vld [vmem:[%s235 + $0x18] sm:$0xff]
        %v250 = vld [vmem:[%s235 + $0x20] sm:$0xff]
        %v251 = vld [vmem:[%s1] sm:$0xff]
        %v252 = vld [vmem:[%s1 + $0x8] sm:$0xff]
        %v253 = vld [vmem:[%s1 + $0x10] sm:$0xff]
        %v254 = vld [vmem:[%s1 + $0x18] sm:$0xff]
        %v255 = vld [vmem:[%s2] sm:$0x1]
        %v257 = vlaneseq
        %v258 = vshrl.u32 %v257, 7
        %v259 = vsub.s32 0, %v258
        %v260 = vrot.slane %v255, %v259
        %vm262 = vcmask 261120
        %v264 = vsel %vm262, %v246, 0
        %v267 = vsel %vm262, %v247, 0
        %v270 = vsel %vm262, %v248, 0
        %v273 = vsel %vm262, %v249, 0
        %v276 = vsel %vm262, %v250, 0
        %278 = vmatprep.subr.mxu0 0.0
        %279 = vmatpush1.msra.mxu0 %v251
        %280 = vmatprep.subr.mxu0 0.0
        %281 = vmatpush1.msra.mxu0 %v252
        %282 = vmatprep.subr.mxu0 0.0
        %283 = vmatpush1.msra.mxu0 %v253
        %284 = vmatprep.subr.mxu0 0.0
        %285 = vmatpush1.msra.mxu0 %v254
        %286 = vmatprep.subr.mxu0 0.0
        %287 = vmatpush1.msra.mxu0 0.0
        %288 = vmatprep.subr.mxu0 0.0
        %289 = vmatpush1.msra.mxu0 0.0
        %290 = vmatprep.subr.mxu0 0.0
        %291 = vmatpush1.msra.mxu0 0.0
        %292 = vmatprep.subr.mxu0 0.0
        %293 = vmatpush1.msra.mxu0 0.0
        %294 = vmatprep.subr.mxu0 0.0
        %295 = vmatpush1.msra.mxu0 0.0
        %296 = vmatprep.subr.mxu0 0.0
        %297 = vmatpush1.msra.mxu0 0.0
        %298 = vmatprep.subr.mxu0 0.0
        %299 = vmatpush1.msra.mxu0 0.0
        %300 = vmatprep.subr.mxu0 0.0
        %301 = vmatpush1.msra.mxu0 0.0
        %302 = vmatprep.subr.mxu0 0.0
        %303 = vmatpush1.msra.mxu0 0.0
        %304 = vmatprep.subr.mxu0 0.0
        %305 = vmatpush1.msra.mxu0 0.0
        %306 = vmatprep.subr.mxu0 0.0
        %307 = vmatpush1.msra.mxu0 0.0
        %308 = vmatprep.subr.mxu0 0.0
        %309 = vmatpush1.msra.mxu0 0.0
        %310 = vmatprep.subr.mxu0 0.0
        %311 = vmatpush1.msra.mxu0 0.0
        %312 = vmatprep.subr.mxu0 0.0
        %313 = vmatpush1.msra.mxu0 0.0
        %314 = vmatprep.subr.mxu0 0.0
        %315 = vmatpush1.msra.mxu0 0.0
        %316 = vmatprep.subr.mxu0 0.0
        %317 = vmatpush1.msra.mxu0 0.0
        %318 = vmatprep.subr.mxu0 0.0
        %319 = vmatpush1.msra.mxu0 0.0
        %320 = vmatprep.subr.mxu0 0.0
        %321 = vmatpush1.msra.mxu0 0.0
        %322 = vmatprep.subr.mxu0 0.0
        %323 = vmatpush1.msra.mxu0 0.0
        %324 = vmatprep.subr.mxu0 0.0
        %325 = vmatpush1.msra.mxu0 0.0
        %326 = vmatprep.subr.mxu0 0.0
        %327 = vmatpush1.msra.mxu0 0.0
        %328 = vmatprep.subr.mxu0 0.0
        %329 = vmatpush1.msra.mxu0 0.0
        %330 = vmatprep.subr.mxu0 0.0
        %331 = vmatpush1.msra.mxu0 0.0
        %332 = vmatprep.subr.mxu0 0.0
        %333 = vmatpush1.msra.mxu0 0.0
        %334 = vmatprep.subr.mxu0 0.0
        %335 = vmatpush1.msra.mxu0 0.0
        %336 = vmatprep.subr.mxu0 0.0
        %337 = vmatpush1.msra.mxu0 0.0
        %338 = vmatprep.subr.mxu0 0.0
        %339 = vmatpush1.msra.mxu0 0.0
        %340 = vmatprep.subr.mxu0 0.0
        %341 = vmatpush1.msra.mxu0 0.0
        %342 = vmatprep.mubr.f32.mxu0 0.0
        %343 = vmatmul.mubr.f32.gmra.mrb[0].mxu0 %v264
        %v344 = vpop.f32.mrb[0].mxu0
        %v345 = vadd.f32 %v260, %v344
        %v346 = vpop.f32.mrb[0].mxu0
        %347 = vmatprep.mubr.f32.mxu0 0.0
        %348 = vmatmul.mubr.f32.gmra.mrb[0].mxu0 %v267
        %v349 = vpop.f32.mrb[0].mxu0
        %v350 = vadd.f32 %v260, %v349
        %v351 = vpop.f32.mrb[0].mxu0
        %352 = vmatprep.mubr.f32.mxu0 0.0
        %353 = vmatmul.mubr.f32.gmra.mrb[0].mxu0 %v270
        %v354 = vpop.f32.mrb[0].mxu0
        %v355 = vadd.f32 %v260, %v354
        %v356 = vpop.f32.mrb[0].mxu0
        %357 = vmatprep.mubr.f32.mxu0 0.0
        %358 = vmatmul.mubr.f32.gmra.mrb[0].mxu0 %v273
        %v359 = vpop.f32.mrb[0].mxu0
        %v360 = vadd.f32 %v260, %v359
        %v361 = vpop.f32.mrb[0].mxu0
        %362 = vmatprep.mubr.f32.mxu0 0.0
        %363 = vmatmul.mubr.f32.gmra.mrb[0].mxu0 %v276
        %v364 = vpop.f32.mrb[0].mxu0
        %v365 = vadd.f32 %v260, %v364
        %v366 = vpop.f32.mrb[0].mxu0
        %367 = vdwg.mxu0
        %v368 = vmul.f32 %v345, 0.2
        %v369 = vmul.f32 %v350, 0.2
        %v370 = vmul.f32 %v355, 0.2
        %v371 = vmul.f32 %v360, 0.2
        %v372 = vmul.f32 %v365, 0.2
        %v373 = vmax.f32 %v345, %v368
        %v374 = vmax.f32 %v350, %v369
        %v375 = vmax.f32 %v355, %v370
        %v376 = vmax.f32 %v360, %v371
        %v377 = vmax.f32 %v365, %v372
        %v378 = vld [vmem:[%s3] sm:$0xff]
        %v379 = vld [vmem:[%s3 + $0x8] sm:$0xff]
        %v380 = vld [vmem:[%s3 + $0x10] sm:$0xff]
        %v381 = vld [vmem:[%s3 + $0x18] sm:$0xff]
        %v382 = vld [vmem:[%s3 + $0x20] sm:$0xff]
        %v383 = vld [vmem:[%s3 + $0x28] sm:$0xff]
        %v384 = vld [vmem:[%s3 + $0x30] sm:$0xff]
        %v385 = vld [vmem:[%s3 + $0x38] sm:$0xff]
        %v386 = vld [vmem:[%s3 + $0x40] sm:$0xff]
        %v387 = vld [vmem:[%s3 + $0x48] sm:$0xff]
        %v388 = vld [vmem:[%s3 + $0x50] sm:$0xff]
        %v389 = vld [vmem:[%s3 + $0x58] sm:$0xff]
        %v390 = vld [vmem:[%s3 + $0x60] sm:$0xff]
        %v391 = vld [vmem:[%s3 + $0x68] sm:$0xff]
        %v392 = vld [vmem:[%s3 + $0x70] sm:$0xff]
        %v393 = vld [vmem:[%s3 + $0x78] sm:$0xff]
        %v394 = vld [vmem:[%s4] sm:$0x1]
        %v396 = vlaneseq
        %v397 = vshrl.u32 %v396, 7
        %v398 = vsub.s32 0, %v397
        %v399 = vrot.slane %v394, %v398
        %401 = vmatprep.subr.mxu0 0.0
        %402 = vmatpush1.msra.mxu0 %v378
        %403 = vmatprep.subr.mxu0 0.0
        %404 = vmatpush1.msra.mxu0 %v379
        %405 = vmatprep.subr.mxu0 0.0
        %406 = vmatpush1.msra.mxu0 %v380
        %407 = vmatprep.subr.mxu0 0.0
        %408 = vmatpush1.msra.mxu0 %v381
        %409 = vmatprep.subr.mxu0 0.0
        %410 = vmatpush1.msra.mxu0 %v382
        %411 = vmatprep.subr.mxu0 0.0
        %412 = vmatpush1.msra.mxu0 %v383
        %413 = vmatprep.subr.mxu0 0.0
        %414 = vmatpush1.msra.mxu0 %v384
        %415 = vmatprep.subr.mxu0 0.0
        %416 = vmatpush1.msra.mxu0 %v385
        %417 = vmatprep.subr.mxu0 0.0
        %418 = vmatpush1.msra.mxu0 %v386
        %419 = vmatprep.subr.mxu0 0.0
        %420 = vmatpush1.msra.mxu0 %v387
        %421 = vmatprep.subr.mxu0 0.0
        %422 = vmatpush1.msra.mxu0 %v388
        %423 = vmatprep.subr.mxu0 0.0
        %424 = vmatpush1.msra.mxu0 %v389
        %425 = vmatprep.subr.mxu0 0.0
        %426 = vmatpush1.msra.mxu0 %v390
        %427 = vmatprep.subr.mxu0 0.0
        %428 = vmatpush1.msra.mxu0 %v391
        %429 = vmatprep.subr.mxu0 0.0
        %430 = vmatpush1.msra.mxu0 %v392
        %431 = vmatprep.subr.mxu0 0.0
        %432 = vmatpush1.msra.mxu0 %v393
        %433 = vmatprep.subr.mxu0 0.0
        %434 = vmatpush1.msra.mxu0 0.0
        %435 = vmatprep.subr.mxu0 0.0
        %436 = vmatpush1.msra.mxu0 0.0
        %437 = vmatprep.subr.mxu0 0.0
        %438 = vmatpush1.msra.mxu0 0.0
        %439 = vmatprep.subr.mxu0 0.0
        %440 = vmatpush1.msra.mxu0 0.0
        %441 = vmatprep.subr.mxu0 0.0
        %442 = vmatpush1.msra.mxu0 0.0
        %443 = vmatprep.subr.mxu0 0.0
        %444 = vmatpush1.msra.mxu0 0.0
        %445 = vmatprep.subr.mxu0 0.0
        %446 = vmatpush1.msra.mxu0 0.0
        %447 = vmatprep.subr.mxu0 0.0
        %448 = vmatpush1.msra.mxu0 0.0
        %449 = vmatprep.subr.mxu0 0.0
        %450 = vmatpush1.msra.mxu0 0.0
        %451 = vmatprep.subr.mxu0 0.0
        %452 = vmatpush1.msra.mxu0 0.0
        %453 = vmatprep.subr.mxu0 0.0
        %454 = vmatpush1.msra.mxu0 0.0
        %455 = vmatprep.subr.mxu0 0.0
        %456 = vmatpush1.msra.mxu0 0.0
        %457 = vmatprep.subr.mxu0 0.0
        %458 = vmatpush1.msra.mxu0 0.0
        %459 = vmatprep.subr.mxu0 0.0
        %460 = vmatpush1.msra.mxu0 0.0
        %461 = vmatprep.subr.mxu0 0.0
        %462 = vmatpush1.msra.mxu0 0.0
        %463 = vmatprep.subr.mxu0 0.0
        %464 = vmatpush1.msra.mxu0 0.0
        %465 = vmatprep.mubr.f32.mxu0 0.0
        %466 = vmatmul.mubr.f32.gmra.mrb[0].mxu0 %v373
        %v467 = vpop.f32.mrb[0].mxu0
        %v468 = vadd.f32 %v399, %v467
        %v469 = vpop.f32.mrb[0].mxu0
        %470 = vmatprep.mubr.f32.mxu0 0.0
        %471 = vmatmul.mubr.f32.gmra.mrb[0].mxu0 %v374
        %v472 = vpop.f32.mrb[0].mxu0
        %v473 = vadd.f32 %v399, %v472
        %v474 = vpop.f32.mrb[0].mxu0
        %475 = vmatprep.mubr.f32.mxu0 0.0
        %476 = vmatmul.mubr.f32.gmra.mrb[0].mxu0 %v375
        %v477 = vpop.f32.mrb[0].mxu0
        %v478 = vadd.f32 %v399, %v477
        %v479 = vpop.f32.mrb[0].mxu0
        %480 = vmatprep.mubr.f32.mxu0 0.0
        %481 = vmatmul.mubr.f32.gmra.mrb[0].mxu0 %v376
        %v482 = vpop.f32.mrb[0].mxu0
        %v483 = vadd.f32 %v399, %v482
        %v484 = vpop.f32.mrb[0].mxu0
        %485 = vmatprep.mubr.f32.mxu0 0.0
        %486 = vmatmul.mubr.f32.gmra.mrb[0].mxu0 %v377
        %v487 = vpop.f32.mrb[0].mxu0
        %v488 = vadd.f32 %v399, %v487
        %v489 = vpop.f32.mrb[0].mxu0
        %490 = vdwg.mxu0
        %v491 = vmax.f32 %v468, 0.0
        %v492 = vmax.f32 %v473, 0.0
        %v493 = vmax.f32 %v478, 0.0
        %v494 = vmax.f32 %v483, 0.0
        %v495 = vmax.f32 %v488, 0.0
        %496 = vst [vmem:[%s226] sm:$0xff] %v491
        %497 = vst [vmem:[%s226 + $0x8] sm:$0xff] %v492
        %498 = vst [vmem:[%s226 + $0x10] sm:$0xff] %v493
        %499 = vst [vmem:[%s226 + $0x18] sm:$0xff] %v494
        %500 = vst [vmem:[%s226 + $0x20] sm:$0xff] %v495
        %s501 = sand.u32 %s134, 1
        %s502 = sand.u32 %s134, 1
        %s503 = smul.addr %s502, 40
        %s504 = scalar_lea.vmem [#allocation2], %s503
        // Predicated region
        $region41: #{_generator_forward_jit.1} parent=39 // pred_check
          %p505 = pneg %p144
        $region42: #{_generator_forward_jit.1} parent=39 // pred_check_branch
          %507 = sbr.rel (%p505) target = $region44
        $region43: #{_generator_forward_jit.1} parent=39 // pred_region
          %s508 = smul.u32 5, %s16
          %s509 = ssub.s32 9, %s508
          %p510 = scmp.lt.s32.totalorder %s509, 5
          %s511 = scalar_select %p510, %s509, 5
          %s512 = smul.u32 128, %s511
          %p513 = scmp.ne.s32.totalorder 0, %s512
          %s514 = smul.addr %s508, 8
          %s515 = scalar_lea.vmem %s5, %s514
          // Predicated region
          $region45: #{_generator_forward_jit.1} parent=43 // pred_check
            %p516 = pneg %p513
          $region46: #{_generator_forward_jit.1} parent=43 // pred_check_branch
            %518 = sbr.rel (%p516) target = $region48
          $region47: #{_generator_forward_jit.1} parent=43 // pred_region
            // Predicated region
            $region49: #{_generator_forward_jit.1} parent=47 // pred_check
              _
            $region50: #{_generator_forward_jit.1} parent=47 // pred_check_branch
              %520 = sbr.rel (0) target = $region52
            $region51: #{_generator_forward_jit.1} parent=47 // pred_region
              // Predicated region
              $region71: #{_generator_forward_jit.1} parent=51 // pred_check
                _
              $region72: #{_generator_forward_jit.1} parent=51 // pred_check_branch
                %578 = sbr.rel (0) target = $region74
              $region73: #{_generator_forward_jit.1} parent=51 // pred_region
                %s579 = sdiv.u32.pop %s511, 5
                %s580 = srem.u32.pop %s511, 5
                // While loop
                $region75: #{_generator_forward_jit.1} parent=73 // loop_pre_header
                  _
                $region76: #{_generator_forward_jit.1} parent=73 // loop_header
                  %s582 = sphi 0, %s584
                  %p583 = scmp.ge.s32.totalorder %s582, %s579
                  %s587 = sphi 0, %s602
                  %s588 = sphi %s504, %s605
                  %s589 = sphi %s515, %s606
                $region77: #{_generator_forward_jit.1} parent=73 // loop_header_branch
                  %586 = sbr.rel (%p583) target = $region81
                $region78: #{_generator_forward_jit.1} parent=73 // loop_body
                  %v590 = vld [vmem:[%s588] sm:$0xff]
                  %591 = vst [vmem:[%s589] sm:$0xff] %v590
                  %v592 = vld [vmem:[%s588 + $0x8] sm:$0xff]
                  %593 = vst [vmem:[%s589 + $0x8] sm:$0xff] %v592
                  %v594 = vld [vmem:[%s588 + $0x10] sm:$0xff]
                  %595 = vst [vmem:[%s589 + $0x10] sm:$0xff] %v594
                  %v596 = vld [vmem:[%s588 + $0x18] sm:$0xff]
                  %597 = vst [vmem:[%s589 + $0x18] sm:$0xff] %v596
                  %v598 = vld [vmem:[%s588 + $0x20] sm:$0xff]
                  %599 = vst [vmem:[%s589 + $0x20] sm:$0xff] %v598
                  %s600 = sadd.s32 1, %s587
                  %p601 = scmp.ge.s32.totalorder %s600, %s579
                  %s602 = scalar_select %p601, 0, %s600
                  %s603 = smul.u32 %s602, 40
                  %s604 = smul.u32 %s602, 40
                  %s605 = scalar_lea.vmem %s504, %s603 [#allocation2]
                  %s606 = scalar_lea.vmem %s515, %s604
                $region79: #{_generator_forward_jit.1} parent=73 // loop_footer
                  %s584 = sadd.s32 %s582, 1
                $region80: #{_generator_forward_jit.1} parent=73 // loop_footer_branch
                  %581 = sbr.rel target = $region76
                $region81: #{_generator_forward_jit.1} parent=73 // loop_exit
                  _
                %s607 = sdiv.u32.pop %s511, 5
                %s608 = srem.u32.pop %s511, 5
                %s609 = smul.u32 %s607, 5
                %s610 = smul.u32 8, %s609
                %s611 = scalar_lea.vmem %s504, %s610 [#allocation2]
                %s612 = smul.u32 8, %s609
                %s613 = scalar_lea.vmem %s515, %s612
                // While loop
                $region82: #{_generator_forward_jit.1} parent=73 // loop_pre_header
                  _
                $region83: #{_generator_forward_jit.1} parent=73 // loop_header
                  %s615 = sphi 0, %s617
                  %p616 = scmp.ge.s32.totalorder %s615, %s608
                  %s620 = sphi 0, %s627
                  %s621 = sphi %s611, %s630
                  %s622 = sphi %s613, %s631
                $region84: #{_generator_forward_jit.1} parent=73 // loop_header_branch
                  %619 = sbr.rel (%p616) target = $region88
                $region85: #{_generator_forward_jit.1} parent=73 // loop_body
                  %v623 = vld [vmem:[%s621] sm:$0xff]
                  %624 = vst [vmem:[%s622] sm:$0xff] %v623
                  %s625 = sadd.s32 1, %s620
                  %p626 = scmp.ge.s32.totalorder %s625, %s608
                  %s627 = scalar_select %p626, 0, %s625
                  %s628 = smul.u32 %s627, 8
                  %s629 = smul.u32 %s627, 8
                  %s630 = scalar_lea.vmem %s611, %s628 [#allocation2]
                  %s631 = scalar_lea.vmem %s613, %s629
                $region86: #{_generator_forward_jit.1} parent=73 // loop_footer
                  %s617 = sadd.s32 %s615, 1
                $region87: #{_generator_forward_jit.1} parent=73 // loop_footer_branch
                  %614 = sbr.rel target = $region83
                $region88: #{_generator_forward_jit.1} parent=73 // loop_exit
                  _
              $region74: #{_generator_forward_jit.1} parent=51 // pred_fallthru
                _
              // Predicated region
              $region89: #{_generator_forward_jit.1} parent=51 // pred_check
                _
              $region90: #{_generator_forward_jit.1} parent=51 // pred_check_branch
                %633 = sbr.rel target = $region92
              $region91: #{_generator_forward_jit.1} parent=51 // pred_region
                _
              $region92: #{_generator_forward_jit.1} parent=51 // pred_fallthru
                _
            $region52: #{_generator_forward_jit.1} parent=47 // pred_fallthru
              _
            // Predicated region
            $region53: #{_generator_forward_jit.1} parent=47 // pred_check
              _
            $region54: #{_generator_forward_jit.1} parent=47 // pred_check_branch
              %522 = sbr.rel target = $region56
            $region55: #{_generator_forward_jit.1} parent=47 // pred_region
              %s524 = sdiv.u32.pop %s511, 5
              %s525 = srem.u32.pop %s511, 5
              // While loop
              $region57: #{_generator_forward_jit.1} parent=55 // loop_pre_header
                _
              $region58: #{_generator_forward_jit.1} parent=55 // loop_header
                %s527 = sphi 0, %s529
                %p528 = scmp.ge.s32.totalorder %s527, %s524
                %s532 = sphi 0, %s547
                %s533 = sphi %s504, %s550
                %s534 = sphi %s515, %s551
              $region59: #{_generator_forward_jit.1} parent=55 // loop_header_branch
                %531 = sbr.rel (%p528) target = $region63
              $region60: #{_generator_forward_jit.1} parent=55 // loop_body
                %v535 = vld [vmem:[%s533] sm:$0xff]
                %536 = vst [vmem:[%s534] sm:$0xff] %v535
                %v537 = vld [vmem:[%s533 + $0x8] sm:$0xff]
                %538 = vst [vmem:[%s534 + $0x8] sm:$0xff] %v537
                %v539 = vld [vmem:[%s533 + $0x10] sm:$0xff]
                %540 = vst [vmem:[%s534 + $0x10] sm:$0xff] %v539
                %v541 = vld [vmem:[%s533 + $0x18] sm:$0xff]
                %542 = vst [vmem:[%s534 + $0x18] sm:$0xff] %v541
                %v543 = vld [vmem:[%s533 + $0x20] sm:$0xff]
                %544 = vst [vmem:[%s534 + $0x20] sm:$0xff] %v543
                %s545 = sadd.s32 1, %s532
                %p546 = scmp.ge.s32.totalorder %s545, %s524
                %s547 = scalar_select %p546, 0, %s545
                %s548 = smul.u32 %s547, 40
                %s549 = smul.u32 %s547, 40
                %s550 = scalar_lea.vmem %s504, %s548 [#allocation2]
                %s551 = scalar_lea.vmem %s515, %s549
              $region61: #{_generator_forward_jit.1} parent=55 // loop_footer
                %s529 = sadd.s32 %s527, 1
              $region62: #{_generator_forward_jit.1} parent=55 // loop_footer_branch
                %526 = sbr.rel target = $region58
              $region63: #{_generator_forward_jit.1} parent=55 // loop_exit
                _
              %s552 = sdiv.u32.pop %s511, 5
              %s553 = srem.u32.pop %s511, 5
              %s554 = smul.u32 %s552, 5
              %s555 = smul.u32 8, %s554
              %s556 = scalar_lea.vmem %s504, %s555 [#allocation2]
              %s557 = smul.u32 8, %s554
              %s558 = scalar_lea.vmem %s515, %s557
              // While loop
              $region64: #{_generator_forward_jit.1} parent=55 // loop_pre_header
                _
              $region65: #{_generator_forward_jit.1} parent=55 // loop_header
                %s560 = sphi 0, %s562
                %p561 = scmp.ge.s32.totalorder %s560, %s553
                %s565 = sphi 0, %s572
                %s566 = sphi %s556, %s575
                %s567 = sphi %s558, %s576
              $region66: #{_generator_forward_jit.1} parent=55 // loop_header_branch
                %564 = sbr.rel (%p561) target = $region70
              $region67: #{_generator_forward_jit.1} parent=55 // loop_body
                %v568 = vld [vmem:[%s566] sm:$0xff]
                %569 = vst [vmem:[%s567] sm:$0xff] %v568
                %s570 = sadd.s32 1, %s565
                %p571 = scmp.ge.s32.totalorder %s570, %s553
                %s572 = scalar_select %p571, 0, %s570
                %s573 = smul.u32 %s572, 8
                %s574 = smul.u32 %s572, 8
                %s575 = scalar_lea.vmem %s556, %s573 [#allocation2]
                %s576 = scalar_lea.vmem %s558, %s574
              $region68: #{_generator_forward_jit.1} parent=55 // loop_footer
                %s562 = sadd.s32 %s560, 1
              $region69: #{_generator_forward_jit.1} parent=55 // loop_footer_branch
                %559 = sbr.rel target = $region65
              $region70: #{_generator_forward_jit.1} parent=55 // loop_exit
                _
            $region56: #{_generator_forward_jit.1} parent=47 // pred_fallthru
              _
          $region48: #{_generator_forward_jit.1} parent=43 // pred_fallthru
            _
          %634 = vnop
        $region44: #{_generator_forward_jit.1} parent=39 // pred_fallthru
          _
      $region40: #{_generator_forward_jit.1} parent=5 // pred_fallthru
        _
      %p635 = scmp.le.s32.totalorder 2, %s11
      // Predicated region
      $region93: #{_generator_forward_jit.1} parent=5 // pred_check
        %p636 = pneg %p635
      $region94: #{_generator_forward_jit.1} parent=5 // pred_check_branch
        %638 = sbr.rel (%p636) target = $region96
      $region95: #{_generator_forward_jit.1} parent=5 // pred_region
        %s639 = ssub.s32 %s11, 2
        // Predicated region
        $region97: #{_generator_forward_jit.1} parent=95 // pred_check
          %p640 = pneg %p150
        $region98: #{_generator_forward_jit.1} parent=95 // pred_check_branch
          %642 = sbr.rel (%p640) target = $region100
        $region99: #{_generator_forward_jit.1} parent=95 // pred_region
          %s643 = sand.u32 %s135, 1
          %s644 = sand.u32 %s135, 1
          %s645 = smul.addr %s644, 40
          %s646 = scalar_lea.vmem [#allocation2], %s645
        $region100: #{_generator_forward_jit.1} parent=95 // pred_fallthru
          _
      $region96: #{_generator_forward_jit.1} parent=5 // pred_fallthru
        _
    $region6: #{_generator_forward_jit.1} parent=1 // loop_footer
      %s15 = sadd.s32 1, %s11
    $region7: #{_generator_forward_jit.1} parent=1 // loop_footer_branch
      %10 = sbr.rel target = $region3
    $region8: #{_generator_forward_jit.1} parent=1 // loop_exit
      _

</llo_original>
